<compile_context>
chip_gen: v7x
topology: tpu7x:2x2x1
jax: 0.10.0
libtpu: 0.0.40
codegen_flags: <defaults>
</compile_context>

<pallas_src>
import jax
import jax.numpy as jnp
from jax.experimental import pallas as pl
from jax.experimental.pallas import tpu as pltpu


def _round_up(n, m):
    return ((n + m - 1) // m) * m


def vmlp_kernel(x_ref, w1_ref, b1_ref, wh_ref, bh_ref, eps_ref, out_ref):
    zp = wh_ref.shape[-1] // 2          # lane-padded latent width (multiple of 128)
    mm_dtype = w1_ref.dtype             # matmul operand dtype (bf16 by default)

    # encoder: Linear(in_features, hidden) + ReLU  (f32 accumulate, f32 epilogue)
    x = x_ref[...].astype(mm_dtype)     # in-kernel cast: no extra HBM round-trip
    h = jnp.dot(x, w1_ref[...], preferred_element_type=jnp.float32) + b1_ref[...]
    h = jnp.maximum(h, 0.0)

    # fused heads: one (tile_b, 2*Zp) GEMM -> [logvar | mu]
    heads = jnp.dot(h.astype(mm_dtype), wh_ref[...],
                    preferred_element_type=jnp.float32) + bh_ref[...]
    logvar = heads[:, :zp]              # tile-aligned view (zp % 128 == 0)
    mu = heads[:, zp:]

    # reparameterization: z = exp(0.5*logvar) * eps + mu  (== sqrt(exp(logvar)) * eps + mu)
    z = jnp.exp(0.5 * logvar) * eps_ref[...] + mu

    # lane-dense output slab [logvar | mu | z]: two 128-aligned slice stores,
    # no in-kernel concatenate / XLU shuffle.
    out_ref[:, :2 * zp] = heads.astype(out_ref.dtype)
    out_ref[:, 2 * zp:] = z.astype(out_ref.dtype)


def variational_mlp_forward(x, w1, b1, wlv, blv, wmu, bmu, eps, *,
                            tile_b=512, matmul_dtype=jnp.bfloat16,
                            out_dtype=jnp.float32):
    """Returns (z, logvar, mu).  eps is the externally supplied N(0,1) noise."""
    B, D_IN = x.shape
    H = w1.shape[1]
    Z = wlv.shape[1]
    assert eps.shape == (B, Z)

    # ---- lane padding (weights only; in production pre-pad the params once) ----
    Hp = _round_up(H, 128)
    Zp = _round_up(Z, 128)

    def pad2(a, rows, cols):
        return jnp.pad(a, ((0, rows - a.shape[0]), (0, cols - a.shape[1])))

    w1_p = pad2(w1, D_IN, Hp).astype(matmul_dtype)                 # (D_IN, Hp)
    b1_p = pad2(b1, 1, Hp)                                         # bias stays f32
    wh_p = jnp.concatenate([pad2(wlv, Hp, Zp), pad2(wmu, Hp, Zp)],
                           axis=1).astype(matmul_dtype)            # (Hp, 2*Zp)
    bh_p = jnp.concatenate([pad2(blv, 1, Zp), pad2(bmu, 1, Zp)], axis=1)
    # TODO(synk): D_IN (GEMM-K of the first matmul) is left unpadded to avoid an
    # extra per-call HBM rewrite of x; pad x/w1 offline if D_IN alignment matters.

    # ---- batch tiling: cdiv + zero-padded rows, never one giant fallback tile ----
    if tile_b is None:
        tile_b = 512
    if B <= tile_b:
        tile_b = B                       # single tile (block == full dim is legal)
        n_tiles = 1
    else:
        tile_b = _round_up(tile_b, 8)    # sublane-aligned streaming tile
        n_tiles = pl.cdiv(B, tile_b)
    B_pad = n_tiles * tile_b
    x_p = x if B_pad == B else jnp.pad(x, ((0, B_pad - B), (0, 0)))
    eps_p = pad2(eps, B_pad, Zp)

    # ---- VMEM budget: single-buffered weights + double-buffered streamed tiles ----
    mm_sz = jnp.dtype(matmul_dtype).itemsize
    out_sz = jnp.dtype(out_dtype).itemsize
    resident = (D_IN * Hp * mm_sz + Hp * 4 + Hp * 2 * Zp * mm_sz + 2 * Zp * 4)
    streamed = 2 * tile_b * (D_IN * x.dtype.itemsize
                             + Zp * eps.dtype.itemsize
                             + 3 * Zp * out_sz)
    vmem_limit = int(min(max(2 * (resident + streamed) + (2 << 20), 16 << 20),
                         64 << 20))      # 64 MiB cap keeps v7x-safe

    keep = pl.Buffered(1)                # resident weights: no double buffers

    out = pl.pallas_call(
        vmlp_kernel,
        out_shape=jax.ShapeDtypeStruct((B_pad, 3 * Zp), out_dtype),
        grid=(n_tiles,),
        in_specs=[
            pl.BlockSpec((tile_b, D_IN), lambda i: (i, 0)),                       # x tile
            pl.BlockSpec((D_IN, Hp),     lambda i: (0, 0), pipeline_mode=keep),   # W1
            pl.BlockSpec((1, Hp),        lambda i: (0, 0), pipeline_mode=keep),   # b1
            pl.BlockSpec((Hp, 2 * Zp),   lambda i: (0, 0), pipeline_mode=keep),   # fused Wh
            pl.BlockSpec((1, 2 * Zp),    lambda i: (0, 0), pipeline_mode=keep),   # fused bh
            pl.BlockSpec((tile_b, Zp),   lambda i: (i, 0)),                       # eps tile
        ],
        out_specs=pl.BlockSpec((tile_b, 3 * Zp), lambda i: (i, 0)),
        compiler_params=pltpu.CompilerParams(
            # v7x: consider pltpu.CORE_PARALLEL here to shard the batch across
            # both TensorCores.
            dimension_semantics=("parallel",),
            vmem_limit_bytes=vmem_limit),
    )(x_p, w1_p, b1_p, wh_p, bh_p, eps_p)

    logvar = out[:B, :Z]
    mu = out[:B, Zp:Zp + Z]
    z = out[:B, 2 * Zp:2 * Zp + Z]
    return z, logvar, mu


def reference_forward(x, w1, b1, wlv, blv, wmu, bmu, eps):
    h = jnp.maximum(x @ w1 + b1, 0.0)
    logvar = h @ wlv + blv
    mu = h @ wmu + bmu
    sigma = jnp.exp(0.5 * logvar)        # == sqrt(exp(logvar)), overflow-safe
    z = sigma * eps + mu
    return z, logvar, mu


if __name__ == "__main__":
    B, D_IN, H, Z = 8, 32, 32, 16

    key = jax.random.PRNGKey(0)
    kx, kw1, kb1, kwlv, kblv, kwmu, kbmu, keps, kx2, keps2 = jax.random.split(key, 10)

    x = jax.random.normal(kx, (B, D_IN), dtype=jnp.float32)
    # deterministic synthetic parameters (PyTorch-Linear-like scale)
    w1 = jax.random.uniform(kw1, (D_IN, H), jnp.float32, -1.0, 1.0) / jnp.sqrt(D_IN)
    b1 = jax.random.uniform(kb1, (1, H), jnp.float32, -1.0, 1.0) / jnp.sqrt(D_IN)
    wlv = jax.random.uniform(kwlv, (H, Z), jnp.float32, -1.0, 1.0) / jnp.sqrt(H)
    blv = jax.random.uniform(kblv, (1, Z), jnp.float32, -1.0, 1.0) / jnp.sqrt(H)
    wmu = jax.random.uniform(kwmu, (H, Z), jnp.float32, -1.0, 1.0) / jnp.sqrt(H)
    bmu = jax.random.uniform(kbmu, (1, Z), jnp.float32, -1.0, 1.0) / jnp.sqrt(H)
    # torch.randn_like(mu) -> externally supplied standard-normal noise.
    eps = jax.random.normal(keps, (B, Z), dtype=jnp.float32)

    z_ref, lv_ref, mu_ref = reference_forward(x, w1, b1, wlv, blv, wmu, bmu, eps)

    # 1) default fast path: bf16 matmul operands, f32 accumulate (loose tolerance).
    z, lv, mu = variational_mlp_forward(x, w1, b1, wlv, blv, wmu, bmu, eps)
    jax.block_until_ready((z, lv, mu))
    assert jnp.allclose(lv, lv_ref, atol=5e-2, rtol=5e-2)
    assert jnp.allclose(mu, mu_ref, atol=5e-2, rtol=5e-2)
    assert jnp.allclose(z, z_ref, atol=5e-2, rtol=5e-2)

    # 2) exact path: f32 matmul operands (tight tolerance).
    z, lv, mu = variational_mlp_forward(x, w1, b1, wlv, blv, wmu, bmu, eps,
                                        matmul_dtype=jnp.float32)
    jax.block_until_ready((z, lv, mu))
    assert jnp.allclose(lv, lv_ref, atol=1e-5, rtol=1e-5)
    assert jnp.allclose(mu, mu_ref, atol=1e-5, rtol=1e-5)
    assert jnp.allclose(z, z_ref, atol=1e-5, rtol=1e-5)

    # 3) irregular batch: exercises the cdiv + row-padding path (B % tile_b != 0).
    B2 = 12
    x2 = jax.random.normal(kx2, (B2, D_IN), dtype=jnp.float32)
    eps2 = jax.random.normal(keps2, (B2, Z), dtype=jnp.float32)
    z2_ref, lv2_ref, mu2_ref = reference_forward(x2, w1, b1, wlv, blv, wmu, bmu, eps2)
    z2, lv2, mu2 = variational_mlp_forward(x2, w1, b1, wlv, blv, wmu, bmu, eps2,
                                           tile_b=8, matmul_dtype=jnp.float32)
    jax.block_until_ready((z2, lv2, mu2))
    assert jnp.allclose(lv2, lv2_ref, atol=1e-5, rtol=1e-5)
    assert jnp.allclose(mu2, mu2_ref, atol=1e-5, rtol=1e-5)
    assert jnp.allclose(z2, z2_ref, atol=1e-5, rtol=1e-5)

    print("KERNEL_OK")
</pallas_src>

<mosaic_0001>
module attributes {stable_mosaic.version = 11 : i64} {
  func.func @vmlp_kernel(%arg0: i32, %arg1: memref<8x32xf32, #tpu.memory_space<vmem>>, %arg2: memref<32x128xbf16, #tpu.memory_space<vmem>>, %arg3: memref<1x128xf32, #tpu.memory_space<vmem>>, %arg4: memref<128x256xbf16, #tpu.memory_space<vmem>>, %arg5: memref<1x256xf32, #tpu.memory_space<vmem>>, %arg6: memref<8x128xf32, #tpu.memory_space<vmem>>, %arg7: memref<8x384xf32, #tpu.memory_space<vmem>>) attributes {dimension_semantics = [#tpu.dimension_semantics<parallel>], iteration_bounds = array<i64: 1>, scalar_prefetch = 0 : i64, scratch_operands = 0 : i64, tpu.core_type = #tpu.core_type<tc>, window_params = [{transform_indices = @transform_0, window_bounds = array<i64: 8, 32>}, {pipeline_mode = #tpu.pipeline_mode<synchronous>, transform_indices = @transform_1, window_bounds = array<i64: 32, 128>}, {pipeline_mode = #tpu.pipeline_mode<synchronous>, transform_indices = @transform_2, window_bounds = array<i64: 1, 128>}, {pipeline_mode = #tpu.pipeline_mode<synchronous>, transform_indices = @transform_3, window_bounds = array<i64: 128, 256>}, {pipeline_mode = #tpu.pipeline_mode<synchronous>, transform_indices = @transform_4, window_bounds = array<i64: 1, 256>}, {transform_indices = @transform_5, window_bounds = array<i64: 8, 128>}, {transform_indices = @transform_6, window_bounds = array<i64: 8, 384>}]} {
    %c0 = arith.constant 0 : index
    %c0_0 = arith.constant 0 : index
    %0 = vector.load %arg1[%c0, %c0_0] : memref<8x32xf32, #tpu.memory_space<vmem>>, vector<8x32xf32>
    %1 = arith.truncf %0 : vector<8x32xf32> to vector<8x32xbf16>
    %c0_1 = arith.constant 0 : index
    %c0_2 = arith.constant 0 : index
    %2 = vector.load %arg2[%c0_1, %c0_2] : memref<32x128xbf16, #tpu.memory_space<vmem>>, vector<32x128xbf16>
    %cst = arith.constant dense<0.000000e+00> : vector<8x128xf32>
    %3 = tpu.matmul %1, %2, %cst {dimension_numbers = #tpu.dot_dimension_numbers<[1], [0], [0], [1], [0, 0, 1, 1], [], []>} : vector<8x32xbf16>, vector<32x128xbf16>, vector<8x128xf32> -> vector<8x128xf32>
    %c0_3 = arith.constant 0 : index
    %c0_4 = arith.constant 0 : index
    %4 = vector.load %arg3[%c0_3, %c0_4] : memref<1x128xf32, #tpu.memory_space<vmem>>, vector<1x128xf32>
    %5 = vector.broadcast %4 : vector<1x128xf32> to vector<8x128xf32>
    %6 = arith.addf %3, %5 : vector<8x128xf32>
    %cst_5 = arith.constant 0.000000e+00 : f32
    %7 = vector.broadcast %cst_5 : f32 to vector<8x128xf32>
    %8 = arith.maximumf %6, %7 : vector<8x128xf32>
    %9 = arith.truncf %8 : vector<8x128xf32> to vector<8x128xbf16>
    %c0_6 = arith.constant 0 : index
    %c0_7 = arith.constant 0 : index
    %10 = vector.load %arg4[%c0_6, %c0_7] : memref<128x256xbf16, #tpu.memory_space<vmem>>, vector<128x256xbf16>
    %cst_8 = arith.constant dense<0.000000e+00> : vector<8x256xf32>
    %11 = tpu.matmul %9, %10, %cst_8 {dimension_numbers = #tpu.dot_dimension_numbers<[1], [0], [0], [1], [0, 0, 1, 1], [], []>} : vector<8x128xbf16>, vector<128x256xbf16>, vector<8x256xf32> -> vector<8x256xf32>
    %c0_9 = arith.constant 0 : index
    %c0_10 = arith.constant 0 : index
    %12 = vector.load %arg5[%c0_9, %c0_10] : memref<1x256xf32, #tpu.memory_space<vmem>>, vector<1x256xf32>
    %13 = vector.broadcast %12 : vector<1x256xf32> to vector<8x256xf32>
    %14 = arith.addf %11, %13 : vector<8x256xf32>
    %15 = vector.extract_strided_slice %14 {offsets = [0, 0], sizes = [8, 128], strides = [1, 1]} : vector<8x256xf32> to vector<8x128xf32>
    %16 = vector.extract_strided_slice %14 {offsets = [0, 128], sizes = [8, 128], strides = [1, 1]} : vector<8x256xf32> to vector<8x128xf32>
    %cst_11 = arith.constant 5.000000e-01 : f32
    %17 = vector.broadcast %cst_11 : f32 to vector<8x128xf32>
    %18 = arith.mulf %17, %15 : vector<8x128xf32>
    %19 = math.exp %18 : vector<8x128xf32>
    %c0_12 = arith.constant 0 : index
    %c0_13 = arith.constant 0 : index
    %20 = vector.load %arg6[%c0_12, %c0_13] : memref<8x128xf32, #tpu.memory_space<vmem>>, vector<8x128xf32>
    %21 = arith.mulf %19, %20 : vector<8x128xf32>
    %22 = arith.addf %21, %16 : vector<8x128xf32>
    %c0_14 = arith.constant 0 : index
    %c0_15 = arith.constant 0 : index
    %23 = vector.load %arg7[%c0_14, %c0_15] : memref<8x384xf32, #tpu.memory_space<vmem>>, vector<8x256xf32>
    tpu.vector_store %arg7[%c0_14, %c0_15], %14 {strides = array<i32>} : memref<8x384xf32, #tpu.memory_space<vmem>>, vector<8x256xf32>,
    %c0_16 = arith.constant 0 : index
    %c256 = arith.constant 256 : index
    %24 = vector.load %arg7[%c0_16, %c256] : memref<8x384xf32, #tpu.memory_space<vmem>>, vector<8x128xf32>
    tpu.vector_store %arg7[%c0_16, %c256], %22 {strides = array<i32>} : memref<8x384xf32, #tpu.memory_space<vmem>>, vector<8x128xf32>,
    return
  }
  func.func @transform_0(%arg0: i32) -> (i32, i32) {
    %c0_i32 = arith.constant 0 : i32
    %c0_i32_0 = arith.constant 0 : i32
    return %arg0, %c0_i32 : i32, i32
  }
  func.func @transform_1(%arg0: i32) -> (i32, i32) {
    %c0_i32 = arith.constant 0 : i32
    %c0_i32_0 = arith.constant 0 : i32
    %c0_i32_1 = arith.constant 0 : i32
    return %c0_i32, %c0_i32_0 : i32, i32
  }
  func.func @transform_2(%arg0: i32) -> (i32, i32) {
    %c0_i32 = arith.constant 0 : i32
    %c0_i32_0 = arith.constant 0 : i32
    %c0_i32_1 = arith.constant 0 : i32
    return %c0_i32, %c0_i32_0 : i32, i32
  }
  func.func @transform_3(%arg0: i32) -> (i32, i32) {
    %c0_i32 = arith.constant 0 : i32
    %c0_i32_0 = arith.constant 0 : i32
    %c0_i32_1 = arith.constant 0 : i32
    return %c0_i32, %c0_i32_0 : i32, i32
  }
  func.func @transform_4(%arg0: i32) -> (i32, i32) {
    %c0_i32 = arith.constant 0 : i32
    %c0_i32_0 = arith.constant 0 : i32
    %c0_i32_1 = arith.constant 0 : i32
    return %c0_i32, %c0_i32_0 : i32, i32
  }
  func.func @transform_5(%arg0: i32) -> (i32, i32) {
    %c0_i32 = arith.constant 0 : i32
    %c0_i32_0 = arith.constant 0 : i32
    return %arg0, %c0_i32 : i32, i32
  }
  func.func @transform_6(%arg0: i32) -> (i32, i32) {
    %c0_i32 = arith.constant 0 : i32
    %c0_i32_0 = arith.constant 0 : i32
    return %arg0, %c0_i32 : i32, i32
  }
}

</mosaic_0001>

<llo_original>
// kernel: tpu_custom_call.1
$region0: #{tpu_custom_call.1}
  #allocation0 [shape = 'u32[]', space=smem, size = 0x4, offset = 0x4, fixed_abs, tag = 'smem constant byte address 0x4 - core index']
  #allocation1 [shape = 'u32[144,128]{1,0:T(1,128)}', space=vmem, size = 0x12000, scoped, tag = 'internal scratch']
  %s0 = inlined_call_operand.hbm [shape: f32[8,32], index: 0, kind: input, shape index: {}]
  %s1 = inlined_call_operand.hbm [shape: bf16[32,128], index: 1, kind: input, shape index: {}]
  %s2 = inlined_call_operand.vmem [shape: f32[1,128], index: 2, kind: input, shape index: {}]
  %s3 = inlined_call_operand.hbm [shape: bf16[128,256], index: 3, kind: input, shape index: {}]
  %s4 = inlined_call_operand.vmem [shape: f32[1,256], index: 4, kind: input, shape index: {}]
  %s5 = inlined_call_operand.vmem [shape: f32[8,128], index: 5, kind: input, shape index: {}]
  %s6 = inlined_call_operand.hbm [shape: f32[8,384], index: 6, kind: output, shape index: {}]
  %s7 = sld [smem:[#allocation0]]
  $region46: #{tpu_custom_call.1} parent=0
    _
  %s9 = ssub.s32 1, %s7
  %s10 = scalar_select 0, %s9, %s7
  $region1: #{tpu_custom_call.1} parent=0
    #allocation2 [shape = 'u8[4096]{0}', space=vmem, size = 0x1000, scoped, tag = 'input window, operand 0, single buffered']
    #allocation3 [shape = 's32[1]{0}', space=sflag, size = 0x4, scoped, tag = 'scoped memory for tpu_custom_call.1']
    #allocation4 [shape = 's32[1]{0}', space=sflag, size = 0x4, scoped, tag = 'scoped memory for tpu_custom_call.1']
    #allocation5 [shape = 'u8[8192]{0}', space=vmem, size = 0x2000, scoped, tag = 'input window, operand 1, single buffered']
    #allocation6 [shape = 's32[1]{0}', space=sflag, size = 0x4, scoped, tag = 'scoped memory for tpu_custom_call.1']
    #allocation7 [shape = 'u8[65536]{0}', space=vmem, size = 0x10000, scoped, tag = 'input window, operand 3, single buffered']
    #allocation8 [shape = 'u8[12288]{0}', space=vmem, size = 0x3000, scoped, tag = 'output window, operand 0, single buffered']
    %11 = vsyncpa [#allocation3], 0
    %12 = vsyncpa [#allocation6], 0
    %13 = vsyncpa [#allocation4], 0
    // Predicated region
    $region2: #{tpu_custom_call.1} parent=1 // pred_check
      _
    $region3: #{tpu_custom_call.1} parent=1 // pred_check_branch
      %15 = sbr.rel (0) target = $region5
    $region4: #{tpu_custom_call.1} parent=1 // pred_region
      %s17 = ssub.s32 128, 128
      %18 = vsyncadd [#allocation3], %s17
      %s20 = sshll.u32 [#allocation2], 4
      %s21 = int_to_ptr.vmem [resolvable:$true] %s20
      %23 = dma.hbm_to_vmem [thread:$0]  %s0, 128, %s21, [#allocation3]
    $region5: #{tpu_custom_call.1} parent=1 // pred_fallthru
      _
    // Predicated region
    $region6: #{tpu_custom_call.1} parent=1 // pred_check
      _
    $region7: #{tpu_custom_call.1} parent=1 // pred_check_branch
      %25 = sbr.rel (0) target = $region9
    $region8: #{tpu_custom_call.1} parent=1 // pred_region
      %s27 = ssub.s32 256, 256
      %28 = vsyncadd [#allocation6], %s27
      %s29 = sshll.u32 [#allocation5], 4
      %s30 = int_to_ptr.vmem [resolvable:$true] %s29
      %35 = dma.hbm_to_vmem [thread:$0]  %s1, 256, %s30, [#allocation6], 64, 64, 4
    $region9: #{tpu_custom_call.1} parent=1 // pred_fallthru
      _
    // Predicated region
    $region10: #{tpu_custom_call.1} parent=1 // pred_check
      _
    $region11: #{tpu_custom_call.1} parent=1 // pred_check_branch
      %37 = sbr.rel (0) target = $region13
    $region12: #{tpu_custom_call.1} parent=1 // pred_region
      _
    $region13: #{tpu_custom_call.1} parent=1 // pred_fallthru
      _
    // Predicated region
    $region14: #{tpu_custom_call.1} parent=1 // pred_check
      _
    $region15: #{tpu_custom_call.1} parent=1 // pred_check_branch
      %39 = sbr.rel (0) target = $region17
    $region16: #{tpu_custom_call.1} parent=1 // pred_region
      %s41 = ssub.s32 2048, 2048
      %42 = vsyncadd [#allocation6], %s41
      %s43 = sshll.u32 [#allocation7], 4
      %s44 = int_to_ptr.vmem [resolvable:$true] %s43
      %49 = dma.hbm_to_vmem [thread:$0]  %s3, 2048, %s44, [#allocation6], 128, 128, 8
    $region17: #{tpu_custom_call.1} parent=1 // pred_fallthru
      _
    // Predicated region
    $region18: #{tpu_custom_call.1} parent=1 // pred_check
      _
    $region19: #{tpu_custom_call.1} parent=1 // pred_check_branch
      %51 = sbr.rel (0) target = $region21
    $region20: #{tpu_custom_call.1} parent=1 // pred_region
      _
    $region21: #{tpu_custom_call.1} parent=1 // pred_fallthru
      _
    // Predicated region
    $region22: #{tpu_custom_call.1} parent=1 // pred_check
      _
    $region23: #{tpu_custom_call.1} parent=1 // pred_check_branch
      %53 = sbr.rel (0) target = $region25
    $region24: #{tpu_custom_call.1} parent=1 // pred_region
      _
    $region25: #{tpu_custom_call.1} parent=1 // pred_fallthru
      _
    // Predicated region
    $region26: #{tpu_custom_call.1} parent=1 // pred_check
      _
    $region27: #{tpu_custom_call.1} parent=1 // pred_check_branch
      %55 = sbr.rel (0) target = $region29
    $region28: #{tpu_custom_call.1} parent=1 // pred_region
      %56 = dma.done [#allocation3], 128
    $region29: #{tpu_custom_call.1} parent=1 // pred_fallthru
      _
    // Predicated region
    $region30: #{tpu_custom_call.1} parent=1 // pred_check
      _
    $region31: #{tpu_custom_call.1} parent=1 // pred_check_branch
      %58 = sbr.rel (0) target = $region33
    $region32: #{tpu_custom_call.1} parent=1 // pred_region
      %59 = dma.done [#allocation6], 256
    $region33: #{tpu_custom_call.1} parent=1 // pred_fallthru
      _
    // Predicated region
    $region34: #{tpu_custom_call.1} parent=1 // pred_check
      _
    $region35: #{tpu_custom_call.1} parent=1 // pred_check_branch
      %61 = sbr.rel (0) target = $region37
    $region36: #{tpu_custom_call.1} parent=1 // pred_region
      %62 = dma.done [#allocation6], 2048
    $region37: #{tpu_custom_call.1} parent=1 // pred_fallthru
      _
    %v64 = vld [vmem:[#allocation2] sm:$0xff]
    %v65 = vpack.c.bf16 %v64, %v64
    %v66 = vld [vmem:[#allocation5] sm:$0xf]
    %v67 = vld [vmem:[#allocation5 + $0x4] sm:$0xf]
    %v68 = vld [vmem:[#allocation5 + $0x8] sm:$0xf]
    %v69 = vld [vmem:[#allocation5 + $0xc] sm:$0xf]
    %v70 = vld [vmem:[%s2] sm:$0x1]
    %v72 = vlaneseq
    %v73 = vshrl.u32 %v72, 7
    %v74 = vsub.s32 0, %v73
    %v75 = vrot.slane %v70, %v74
    %v81 = vunpack.c.l.b16 %v66
    %v82 = vunpack.c.l.b16 %v67
    %v83 = vunpack.c.l.b16 %v68
    %v84 = vunpack.c.l.b16 %v69
    %v85 = vpack.c.b16 %v82, %v81
    %v86 = vpack.c.b16 %v84, %v83
    %vm89 = vcmask 261120
    %v91 = vsel %vm89, %v65, 0
    %93 = vmatprep.subr.bf16.mxu0 0
    %94 = vmatpush1.bf16.msra.mxu0 %v85
    %95 = vmatprep.subr.bf16.mxu0 0
    %96 = vmatpush1.bf16.msra.mxu0 %v86
    %97 = vmatprep.subr.bf16.mxu0 0
    %98 = vmatpush1.bf16.msra.mxu0 0
    %99 = vmatprep.subr.bf16.mxu0 0
    %100 = vmatpush1.bf16.msra.mxu0 0
    %101 = vmatprep.subr.bf16.mxu0 0
    %102 = vmatpush1.bf16.msra.mxu0 0
    %103 = vmatprep.subr.bf16.mxu0 0
    %104 = vmatpush1.bf16.msra.mxu0 0
    %105 = vmatprep.subr.bf16.mxu0 0
    %106 = vmatpush1.bf16.msra.mxu0 0
    %107 = vmatprep.subr.bf16.mxu0 0
    %108 = vmatpush1.bf16.msra.mxu0 0
    %109 = vmatprep.subr.bf16.mxu0 0
    %110 = vmatpush1.bf16.msra.mxu0 0
    %111 = vmatprep.subr.bf16.mxu0 0
    %112 = vmatpush1.bf16.msra.mxu0 0
    %113 = vmatprep.subr.bf16.mxu0 0
    %114 = vmatpush1.bf16.msra.mxu0 0
    %115 = vmatprep.subr.bf16.mxu0 0
    %116 = vmatpush1.bf16.msra.mxu0 0
    %117 = vmatprep.subr.bf16.mxu0 0
    %118 = vmatpush1.bf16.msra.mxu0 0
    %119 = vmatprep.subr.bf16.mxu0 0
    %120 = vmatpush1.bf16.msra.mxu0 0
    %121 = vmatprep.subr.bf16.mxu0 0
    %122 = vmatpush1.bf16.msra.mxu0 0
    %123 = vmatprep.subr.bf16.mxu0 0
    %124 = vmatpush1.bf16.msra.mxu0 0
    %125 = vmatprep.mubr.bf16.mxu0 0
    %126 = vmatmul.mubr.bf16.gmra.mrb[0].mxu0 %v91
    %v127 = vpop.f32.mrb[0].mxu0
    %v128 = vadd.f32 %v75, %v127
    %v129 = vpop.f32.mrb[0].mxu0
    %v130 = vpop.f32.mrb[0].mxu0
    %v131 = vpop.f32.mrb[0].mxu0
    %132 = vdwg.mxu0
    %v133 = vmax.f32 %v128, 0.0
    %v134 = vpack.c.bf16 %v133, %v133
    %v135 = vld [vmem:[#allocation7] sm:$0xff]
    %v136 = vld [vmem:[#allocation7 + $0x8] sm:$0xff]
    %v137 = vld [vmem:[#allocation7 + $0x10] sm:$0xff]
    %v138 = vld [vmem:[#allocation7 + $0x18] sm:$0xff]
    %v139 = vld [vmem:[#allocation7 + $0x20] sm:$0xff]
    %v140 = vld [vmem:[#allocation7 + $0x28] sm:$0xff]
    %v141 = vld [vmem:[#allocation7 + $0x30] sm:$0xff]
    %v142 = vld [vmem:[#allocation7 + $0x38] sm:$0xff]
    %v143 = vld [vmem:[#allocation7 + $0x40] sm:$0xff]
    %v144 = vld [vmem:[#allocation7 + $0x48] sm:$0xff]
    %v145 = vld [vmem:[#allocation7 + $0x50] sm:$0xff]
    %v146 = vld [vmem:[#allocation7 + $0x58] sm:$0xff]
    %v147 = vld [vmem:[#allocation7 + $0x60] sm:$0xff]
    %v148 = vld [vmem:[#allocation7 + $0x68] sm:$0xff]
    %v149 = vld [vmem:[#allocation7 + $0x70] sm:$0xff]
    %v150 = vld [vmem:[#allocation7 + $0x78] sm:$0xff]
    %v151 = vld [vmem:[%s4] sm:$0x3]
    %v153 = vlaneseq
    %v154 = vshrl.u32 %v153, 7
    %v155 = vsub.s32 0, %v154
    %v156 = vrot.slane %v151, %v155
    %v157 = vlaneseq
    %v158 = vshrl.u32 %v157, 7
    %v159 = vsub.s32 1, %v158
    %v160 = vrot.slane %v151, %v159
    %v179 = vunpack.c.l.b16 %v135
    %v180 = vunpack.c.h.b16 %v135
    %v181 = vunpack.c.l.b16 %v136
    %v182 = vunpack.c.h.b16 %v136
    %v183 = vunpack.c.l.b16 %v137
    %v184 = vunpack.c.h.b16 %v137
    %v185 = vunpack.c.l.b16 %v138
    %v186 = vunpack.c.h.b16 %v138
    %v187 = vunpack.c.l.b16 %v139
    %v188 = vunpack.c.h.b16 %v139
    %v189 = vunpack.c.l.b16 %v140
    %v190 = vunpack.c.h.b16 %v140
    %v191 = vunpack.c.l.b16 %v141
    %v192 = vunpack.c.h.b16 %v141
    %v193 = vunpack.c.l.b16 %v142
    %v194 = vunpack.c.h.b16 %v142
    %v195 = vunpack.c.l.b16 %v143
    %v196 = vunpack.c.h.b16 %v143
    %v197 = vunpack.c.l.b16 %v144
    %v198 = vunpack.c.h.b16 %v144
    %v199 = vunpack.c.l.b16 %v145
    %v200 = vunpack.c.h.b16 %v145
    %v201 = vunpack.c.l.b16 %v146
    %v202 = vunpack.c.h.b16 %v146
    %v203 = vunpack.c.l.b16 %v147
    %v204 = vunpack.c.h.b16 %v147
    %v205 = vunpack.c.l.b16 %v148
    %v206 = vunpack.c.h.b16 %v148
    %v207 = vunpack.c.l.b16 %v149
    %v208 = vunpack.c.h.b16 %v149
    %v209 = vunpack.c.l.b16 %v150
    %v210 = vunpack.c.h.b16 %v150
    %v211 = vpack.c.b16 %v181, %v179
    %v212 = vpack.c.b16 %v182, %v180
    %v213 = vpack.c.b16 %v185, %v183
    %v214 = vpack.c.b16 %v186, %v184
    %v215 = vpack.c.b16 %v189, %v187
    %v216 = vpack.c.b16 %v190, %v188
    %v217 = vpack.c.b16 %v193, %v191
    %v218 = vpack.c.b16 %v194, %v192
    %v219 = vpack.c.b16 %v197, %v195
    %v220 = vpack.c.b16 %v198, %v196
    %v221 = vpack.c.b16 %v201, %v199
    %v222 = vpack.c.b16 %v202, %v200
    %v223 = vpack.c.b16 %v205, %v203
    %v224 = vpack.c.b16 %v206, %v204
    %v225 = vpack.c.b16 %v209, %v207
    %v226 = vpack.c.b16 %v210, %v208
    %243 = vmatprep.subr.bf16.mxu0 %v212
    %244 = vmatpush1.bf16.msra.mxu0 %v211
    %245 = vmatprep.subr.bf16.mxu0 %v214
    %246 = vmatpush1.bf16.msra.mxu0 %v213
    %247 = vmatprep.subr.bf16.mxu0 %v216
    %248 = vmatpush1.bf16.msra.mxu0 %v215
    %249 = vmatprep.subr.bf16.mxu0 %v218
    %250 = vmatpush1.bf16.msra.mxu0 %v217
    %251 = vmatprep.subr.bf16.mxu0 %v220
    %252 = vmatpush1.bf16.msra.mxu0 %v219
    %253 = vmatprep.subr.bf16.mxu0 %v222
    %254 = vmatpush1.bf16.msra.mxu0 %v221
    %255 = vmatprep.subr.bf16.mxu0 %v224
    %256 = vmatpush1.bf16.msra.mxu0 %v223
    %257 = vmatprep.subr.bf16.mxu0 %v226
    %258 = vmatpush1.bf16.msra.mxu0 %v225
    %259 = vmatprep.subr.bf16.mxu0 0
    %260 = vmatpush1.bf16.msra.mxu0 0
    %261 = vmatprep.subr.bf16.mxu0 0
    %262 = vmatpush1.bf16.msra.mxu0 0
    %263 = vmatprep.subr.bf16.mxu0 0
    %264 = vmatpush1.bf16.msra.mxu0 0
    %265 = vmatprep.subr.bf16.mxu0 0
    %266 = vmatpush1.bf16.msra.mxu0 0
    %267 = vmatprep.subr.bf16.mxu0 0
    %268 = vmatpush1.bf16.msra.mxu0 0
    %269 = vmatprep.subr.bf16.mxu0 0
    %270 = vmatpush1.bf16.msra.mxu0 0
    %271 = vmatprep.subr.bf16.mxu0 0
    %272 = vmatpush1.bf16.msra.mxu0 0
    %273 = vmatprep.subr.bf16.mxu0 0
    %274 = vmatpush1.bf16.msra.mxu0 0
    %275 = vmatprep.mubr.bf16.mxu0 0
    %276 = vmatmul.mubr.bf16.gmra.mrb[0].mxu0 %v134
    %v277 = vpop.f32.mrb[0].mxu0
    %v278 = vadd.f32 %v156, %v277
    %v279 = vpop.f32.mrb[0].mxu0
    %v280 = vadd.f32 %v160, %v279
    %v281 = vpop.f32.mrb[0].mxu0
    %v282 = vpop.f32.mrb[0].mxu0
    %283 = vdwg.mxu0
    %v284 = vmul.f32 %v278, 0.5
    %v285 = vmul.f32 %v284, 1.442695
    %v286 = vpow.pop %v285
    %v287 = vld [vmem:[%s5] sm:$0xff]
    %v288 = vmul.f32 %v286, %v287
    %v289 = vadd.f32 %v288, %v280
    %290 = vst [vmem:[#allocation8] sm:$0xff] %v278
    %291 = vst [vmem:[#allocation8 + $0x8] sm:$0xff] %v280
    %292 = vst [vmem:[#allocation8 + $0x10] sm:$0xff] %v289
    // Predicated region
    $region38: #{tpu_custom_call.1} parent=1 // pred_check
      _
    $region39: #{tpu_custom_call.1} parent=1 // pred_check_branch
      %294 = sbr.rel (0) target = $region41
    $region40: #{tpu_custom_call.1} parent=1 // pred_region
      %s296 = ssub.s32 384, 384
      %297 = vsyncadd [#allocation4], %s296
      %s299 = sshll.u32 [#allocation8], 4
      %s300 = int_to_ptr.vmem [resolvable:$true] %s299
      %302 = dma.vmem_to_hbm [thread:$0]  %s300, 384, %s6, [#allocation4]
    $region41: #{tpu_custom_call.1} parent=1 // pred_fallthru
      _
    // Predicated region
    $region42: #{tpu_custom_call.1} parent=1 // pred_check
      _
    $region43: #{tpu_custom_call.1} parent=1 // pred_check_branch
      %304 = sbr.rel (0) target = $region45
    $region44: #{tpu_custom_call.1} parent=1 // pred_region
      %305 = dma.done [#allocation4], 384
    $region45: #{tpu_custom_call.1} parent=1 // pred_fallthru
      _
    %306 = vsyncpa [#allocation3], 1
    %307 = vsyncpa [#allocation6], 1
    %308 = vsyncpa [#allocation4], 1

</llo_original>
